<compile_context>
chip_gen: v5e
topology: v5e:2x2
jax: 0.10.0
libtpu: 0.0.40
codegen_flags: <defaults>
</compile_context>

<pallas_src>
import numpy as np
import jax
import jax.numpy as jnp
from jax.experimental import pallas as pl
from jax.experimental.pallas import tpu as pltpu


# ----------------------------------------------------------------------------
# Static layer metadata + weight-slab packing
# ----------------------------------------------------------------------------
def _round_up(x, m):
    return (x + m - 1) // m * m


def _layer_dims(layer):
    """(in, out) of every Linear in slab order: encoder, enc_mu, decoder, 3 heads."""
    enc = [(layer[i], layer[i + 1]) for i in range(len(layer) - 2)]
    mu = [(layer[-2], layer[-1])]
    rev = layer[:0:-1]
    dec = [(rev[i], rev[i + 1]) for i in range(len(rev) - 1)]
    heads = [(layer[1], layer[0])] * 3
    return enc + mu + dec + heads, len(enc), len(dec)


def _build_meta(layer_cfgs):
    """Static slab layout shared by the packer and the kernel."""
    wmax = max(do for cfg in layer_cfgs for (_, do) in _layer_dims(cfg)[0])
    dmax = max(cfg[0] for cfg in layer_cfgs)
    metas, row = [], 0
    for cfg in layer_cfgs:
        dims, n_enc, n_dec = _layer_dims(cfg)
        entries = []
        for (di, do) in dims:
            wr = row                      # weight rows [wr, wr+di)
            br = wr + _round_up(di, 8)    # bias row (sublane-aligned block)
            entries.append((wr, br, di, do))
            row = br + 8
        metas.append(dict(layers=entries, n_enc=n_enc, n_dec=n_dec,
                          din=cfg[0], latent=cfg[-1]))
    return metas, row, wmax, dmax


def pack_multiview_params(all_params, layer_cfgs):
    """One-time (init) packing of every view's weights + biases into one slab."""
    metas, total_rows, wmax, _ = _build_meta(layer_cfgs)
    slab = np.zeros((total_rows, wmax), np.float32)
    for params, meta in zip(all_params, metas):
        mats = (list(params["encoder"]) + [params["enc_mu"]] + list(params["decoder"])
                + [params["dec_mean"], params["dec_disp"], params["dec_pi"]])
        for (wr, br, di, do), (w, b) in zip(meta["layers"], mats):
            slab[wr:wr + di, 0:do] = np.asarray(w, np.float32)
            slab[br, 0:do] = np.asarray(b, np.float32).reshape(-1)
    return jnp.asarray(slab)


# ----------------------------------------------------------------------------
# Fused multi-view kernel
# ----------------------------------------------------------------------------
def _make_mv_kernel(metas, B, col_offsets):
    """Both views' full AE forward in one body, weights carved from one packed
    VMEM slab via static ref slices, single lane-dense output slab."""

    def kernel(x_ref, w_ref, out_ref):
        for vi, meta in enumerate(metas):
            din, latent = meta["din"], meta["latent"]
            layers = meta["layers"]
            li = 0
            r0 = vi * 4 * B
            c0 = col_offsets[vi]

            # (4B, din): rows [0,B) clean input, rows [B,4B) three independent
            # noisy replicas (noise added in the wrapper — no in-kernel concat).
            h = x_ref[r0:r0 + 4 * B, 0:din]

            # Encoder MLP (Linear + ReLU), shared by clean + noisy rows.
            for _ in range(meta["n_enc"]):
                wr, br, di, do = layers[li]; li += 1
                h = jnp.maximum(
                    jnp.dot(h, w_ref[wr:wr + di, 0:do],
                            preferred_element_type=jnp.float32)
                    + w_ref[br:br + 1, 0:do], 0.0)

            # enc_mu (no activation).
            wr, br, di, do = layers[li]; li += 1
            z = (jnp.dot(h, w_ref[wr:wr + di, 0:do],
                         preferred_element_type=jnp.float32)
                 + w_ref[br:br + 1, 0:do])                       # (4B, latent)

            # Decoder MLP on the three noisy latents only.
            d = z[B:, :]                                         # (3B, latent)
            for _ in range(meta["n_dec"]):
                wr, br, di, do = layers[li]; li += 1
                d = jnp.maximum(
                    jnp.dot(d, w_ref[wr:wr + di, 0:do],
                            preferred_element_type=jnp.float32)
                    + w_ref[br:br + 1, 0:do], 0.0)

            # Heads: replica k feeds head k only ("keep output k of ae(v) call k").
            wr, br, di, do = layers[li]; li += 1                  # _dec_mean + MeanAct
            hm = (jnp.dot(d[0:B, :], w_ref[wr:wr + di, 0:do],
                          preferred_element_type=jnp.float32)
                  + w_ref[br:br + 1, 0:do])
            out_ref[:, c0:c0 + din] = jnp.clip(jnp.exp(hm), 1e-5, 1e6)

            wr, br, di, do = layers[li]; li += 1                  # _dec_disp + DispAct
            hd = (jnp.dot(d[B:2 * B, :], w_ref[wr:wr + di, 0:do],
                          preferred_element_type=jnp.float32)
                  + w_ref[br:br + 1, 0:do])
            out_ref[:, c0 + din:c0 + 2 * din] = jnp.clip(jax.nn.softplus(hd), 1e-4, 1e4)

            wr, br, di, do = layers[li]; li += 1                  # _dec_pi + Sigmoid
            hp = (jnp.dot(d[2 * B:3 * B, :], w_ref[wr:wr + di, 0:do],
                          preferred_element_type=jnp.float32)
                  + w_ref[br:br + 1, 0:do])
            out_ref[:, c0 + 2 * din:c0 + 3 * din] = jax.nn.sigmoid(hp)

            # Clean-input latent z0 (noise-free, per the PyTorch reference).
            out_ref[:, c0 + 3 * din:c0 + 3 * din + latent] = z[0:B, :]

    return kernel


def _cost_estimate(metas, B):
    flops, trans = 0, 0
    for m in metas:
        rows = [4 * B] * (m["n_enc"] + 1) + [3 * B] * m["n_dec"] + [B] * 3
        for r, (_, _, di, do) in zip(rows, m["layers"]):
            flops += 2 * r * di * do
        trans += 4 * B * m["din"]      # exp / softplus / sigmoid head math
    return flops, trans


# ----------------------------------------------------------------------------
# Jitted multi-view forward (ONE pallas_call for all views)
# ----------------------------------------------------------------------------
def build_multiview_forward(layer_cfgs, B):
    metas, total_rows, wmax, dmax = _build_meta(layer_cfgs)

    col_offsets, tc = [], 0
    for m in metas:
        col_offsets.append(tc)
        tc += 3 * m["din"] + m["latent"]
    total_cols = tc
    n_views = len(metas)

    flops, trans = _cost_estimate(metas, B)
    bytes_accessed = 4 * (n_views * 4 * B * dmax + total_rows * wmax + B * total_cols)

    fused = pl.pallas_call(
        _make_mv_kernel(metas, B, col_offsets),
        out_shape=jax.ShapeDtypeStruct((B, total_cols), jnp.float32),
        in_specs=[pl.BlockSpec(memory_space=pltpu.MemorySpace.VMEM),
                  pl.BlockSpec(memory_space=pltpu.MemorySpace.VMEM)],
        out_specs=pl.BlockSpec(memory_space=pltpu.MemorySpace.VMEM),
        cost_estimate=pl.CostEstimate(flops=int(flops), transcendentals=int(trans),
                                      bytes_accessed=int(bytes_accessed)),
    )

    def forward(w_all, mv_input, noise_key):
        views = mv_input[0]
        assert len(views) == n_views
        blocks = []
        for vi, x in enumerate(views):
            b, din = x.shape
            vkey = jax.random.fold_in(noise_key, vi)
            # Three independent Gaussian draws (one per noisy ae(v) call), sigma=1.5.
            noise = jax.random.normal(vkey, (3 * b, din), x.dtype) * 1.5
            xin = jnp.concatenate([x, jnp.tile(x, (3, 1)) + noise], axis=0)  # (4B, din)
            if din < dmax:
                xin = jnp.pad(xin, ((0, 0), (0, dmax - din)))
            blocks.append(xin.astype(jnp.float32))
        x_all = jnp.concatenate(blocks, axis=0)          # (n_views*4B, dmax)

        out = fused(x_all, w_all)                        # single lane-dense output

        lat, mean, disp, pi = [], [], [], []
        for vi, m in enumerate(metas):
            c0, din, latent = col_offsets[vi], m["din"], m["latent"]
            mean.append(out[:, c0:c0 + din])
            disp.append(out[:, c0 + din:c0 + 2 * din])
            pi.append(out[:, c0 + 2 * din:c0 + 3 * din])
            lat.append(out[:, c0 + 3 * din:c0 + 3 * din + latent])
        return [lat, mean, disp, pi]

    return jax.jit(forward)


# ----------------------------------------------------------------------------
# Parameter construction (PyTorch nn.Linear default init, (in,out) layout)
# ----------------------------------------------------------------------------
def _init_linear(key, din, dout):
    kw, kb = jax.random.split(key)
    bound = 1.0 / jnp.sqrt(float(din))
    w = jax.random.uniform(kw, (din, dout), jnp.float32, -bound, bound)
    b = jax.random.uniform(kb, (1, dout), jnp.float32, -bound, bound)
    return (w, b)


def init_autoencoder(key, layer):
    """layer == cfg.Layer = [input_dim, hidden..., latent_dim]."""
    n_enc = len(layer) - 2
    dec_dims = layer[:0:-1]
    n_dec = len(dec_dims) - 1
    keys = jax.random.split(key, n_enc + 1 + n_dec + 3)
    k = iter(keys)
    return {
        "encoder": [_init_linear(next(k), layer[i], layer[i + 1]) for i in range(n_enc)],
        "enc_mu": _init_linear(next(k), layer[-2], layer[-1]),
        "decoder": [_init_linear(next(k), dec_dims[i], dec_dims[i + 1]) for i in range(n_dec)],
        "dec_mean": _init_linear(next(k), layer[1], layer[0]),
        "dec_disp": _init_linear(next(k), layer[1], layer[0]),
        "dec_pi": _init_linear(next(k), layer[1], layer[0]),
    }


# ----------------------------------------------------------------------------
# Pure-JAX reference (matches the PyTorch Autoencoder / multiview semantics)
# ----------------------------------------------------------------------------
def autoencoder_ref(params, x, noise):
    hp = jax.lax.Precision.HIGHEST

    def encode(inp):
        h = inp
        for w, b in params["encoder"]:
            h = jnp.maximum(jnp.dot(h, w, precision=hp) + b, 0.0)
        return jnp.dot(h, params["enc_mu"][0], precision=hp) + params["enc_mu"][1]

    def decode(zz):
        h = zz
        for w, b in params["decoder"]:
            h = jnp.maximum(jnp.dot(h, w, precision=hp) + b, 0.0)
        return h

    B = x.shape[0]
    z0 = encode(x)                                             # noise-free pass
    h0 = decode(encode(x + noise[0:B]))
    mean = jnp.clip(jnp.exp(jnp.dot(h0, params["dec_mean"][0], precision=hp)
                            + params["dec_mean"][1]), 1e-5, 1e6)
    h1 = decode(encode(x + noise[B:2 * B]))
    disp = jnp.clip(jax.nn.softplus(jnp.dot(h1, params["dec_disp"][0], precision=hp)
                                    + params["dec_disp"][1]), 1e-4, 1e4)
    h2 = decode(encode(x + noise[2 * B:3 * B]))
    pi = jax.nn.sigmoid(jnp.dot(h2, params["dec_pi"][0], precision=hp)
                        + params["dec_pi"][1])
    return z0, mean, disp, pi


# ----------------------------------------------------------------------------
# Main
# ----------------------------------------------------------------------------
if __name__ == "__main__":
    root = jax.random.PRNGKey(0)
    k_p0, k_p1, k_x0, k_x1, k_noise = jax.random.split(root, 5)

    layer_cfgs = [[64, 32, 16, 8], [48, 32, 8]]   # per-view cfg.Layer
    all_params = [init_autoencoder(k_p0, layer_cfgs[0]),
                  init_autoencoder(k_p1, layer_cfgs[1])]

    B = 8
    x0 = jax.random.normal(k_x0, (B, layer_cfgs[0][0]), jnp.float32)
    x1 = jax.random.normal(k_x1, (B, layer_cfgs[1][0]), jnp.float32)
    mv_input = [[x0, x1]]

    # One-time "module construction": pack every weight/bias into a single slab.
    w_all = pack_multiview_params(all_params, layer_cfgs)
    forward = build_multiview_forward(layer_cfgs, B)

    out = forward(w_all, mv_input, k_noise)
    out = jax.block_until_ready(out)

    # Shape checks: [latents, zinb_means, zinb_disps, zinb_pis]
    for vi, cfg in enumerate(layer_cfgs):
        assert out[0][vi].shape == (B, cfg[-1])
        for head in (1, 2, 3):
            assert out[head][vi].shape == (B, cfg[0])
    assert all(bool(jnp.all(jnp.isfinite(o))) for grp in out for o in grp)

    # Numerical check against the pure-JAX reference (same noise draws).
    for vi, (params, x, cfg) in enumerate(zip(all_params, [x0, x1], layer_cfgs)):
        vkey = jax.random.fold_in(k_noise, vi)
        noise = jax.random.normal(vkey, (3 * B, cfg[0]), jnp.float32) * 1.5
        refs = autoencoder_ref(params, x, noise)
        got = (out[0][vi], out[1][vi], out[2][vi], out[3][vi])
        for g, r in zip(got, refs):
            assert bool(jnp.allclose(g, r, rtol=5e-3, atol=2e-3)), "mismatch vs reference"

    print("KERNEL_OK")
</pallas_src>

<mosaic_0001>
module attributes {stable_mosaic.version = 11 : i64} {
  func.func @kernel(%arg0: memref<64x64xf32, #tpu.memory_space<vmem>>, %arg1: memref<528x64xf32, #tpu.memory_space<vmem>>, %arg2: memref<8x352xf32, #tpu.memory_space<vmem>>) attributes {dimension_semantics = [], scalar_prefetch = 0 : i64, scratch_operands = 0 : i64, tpu.core_type = #tpu.core_type<tc>} {
    %c0 = arith.constant 0 : index
    %c0_0 = arith.constant 0 : index
    %0 = vector.load %arg0[%c0, %c0_0] : memref<64x64xf32, #tpu.memory_space<vmem>>, vector<32x64xf32>
    %c0_1 = arith.constant 0 : index
    %c0_2 = arith.constant 0 : index
    %1 = vector.load %arg1[%c0_1, %c0_2] : memref<528x64xf32, #tpu.memory_space<vmem>>, vector<64x32xf32>
    %cst = arith.constant dense<0.000000e+00> : vector<32x32xf32>
    %2 = tpu.matmul %0, %1, %cst {dimension_numbers = #tpu.dot_dimension_numbers<[1], [0], [0], [1], [0, 0, 1, 1], [], []>} : vector<32x64xf32>, vector<64x32xf32>, vector<32x32xf32> -> vector<32x32xf32>
    %c64 = arith.constant 64 : index
    %c0_3 = arith.constant 0 : index
    %3 = vector.load %arg1[%c64, %c0_3] : memref<528x64xf32, #tpu.memory_space<vmem>>, vector<1x32xf32>
    %4 = vector.broadcast %3 : vector<1x32xf32> to vector<32x32xf32>
    %5 = arith.addf %2, %4 : vector<32x32xf32>
    %cst_4 = arith.constant 0.000000e+00 : f32
    %6 = vector.broadcast %cst_4 : f32 to vector<32x32xf32>
    %7 = arith.maximumf %5, %6 : vector<32x32xf32>
    %c72 = arith.constant 72 : index
    %c0_5 = arith.constant 0 : index
    %8 = vector.load %arg1[%c72, %c0_5] : memref<528x64xf32, #tpu.memory_space<vmem>>, vector<32x16xf32>
    %cst_6 = arith.constant dense<0.000000e+00> : vector<32x16xf32>
    %9 = tpu.matmul %7, %8, %cst_6 {dimension_numbers = #tpu.dot_dimension_numbers<[1], [0], [0], [1], [0, 0, 1, 1], [], []>} : vector<32x32xf32>, vector<32x16xf32>, vector<32x16xf32> -> vector<32x16xf32>
    %c104 = arith.constant 104 : index
    %c0_7 = arith.constant 0 : index
    %10 = vector.load %arg1[%c104, %c0_7] : memref<528x64xf32, #tpu.memory_space<vmem>>, vector<1x16xf32>
    %11 = vector.broadcast %10 : vector<1x16xf32> to vector<32x16xf32>
    %12 = arith.addf %9, %11 : vector<32x16xf32>
    %cst_8 = arith.constant 0.000000e+00 : f32
    %13 = vector.broadcast %cst_8 : f32 to vector<32x16xf32>
    %14 = arith.maximumf %12, %13 : vector<32x16xf32>
    %c112 = arith.constant 112 : index
    %c0_9 = arith.constant 0 : index
    %15 = vector.load %arg1[%c112, %c0_9] : memref<528x64xf32, #tpu.memory_space<vmem>>, vector<16x8xf32>
    %cst_10 = arith.constant dense<0.000000e+00> : vector<32x8xf32>
    %16 = tpu.matmul %14, %15, %cst_10 {dimension_numbers = #tpu.dot_dimension_numbers<[1], [0], [0], [1], [0, 0, 1, 1], [], []>} : vector<32x16xf32>, vector<16x8xf32>, vector<32x8xf32> -> vector<32x8xf32>
    %c128 = arith.constant 128 : index
    %c0_11 = arith.constant 0 : index
    %17 = vector.load %arg1[%c128, %c0_11] : memref<528x64xf32, #tpu.memory_space<vmem>>, vector<1x8xf32>
    %18 = vector.broadcast %17 : vector<1x8xf32> to vector<32x8xf32>
    %19 = arith.addf %16, %18 : vector<32x8xf32>
    %20 = vector.extract_strided_slice %19 {offsets = [8, 0], sizes = [24, 8], strides = [1, 1]} : vector<32x8xf32> to vector<24x8xf32>
    %c136 = arith.constant 136 : index
    %c0_12 = arith.constant 0 : index
    %21 = vector.load %arg1[%c136, %c0_12] : memref<528x64xf32, #tpu.memory_space<vmem>>, vector<8x16xf32>
    %cst_13 = arith.constant dense<0.000000e+00> : vector<24x16xf32>
    %22 = tpu.matmul %20, %21, %cst_13 {dimension_numbers = #tpu.dot_dimension_numbers<[1], [0], [0], [1], [0, 0, 1, 1], [], []>} : vector<24x8xf32>, vector<8x16xf32>, vector<24x16xf32> -> vector<24x16xf32>
    %c144 = arith.constant 144 : index
    %c0_14 = arith.constant 0 : index
    %23 = vector.load %arg1[%c144, %c0_14] : memref<528x64xf32, #tpu.memory_space<vmem>>, vector<1x16xf32>
    %24 = vector.broadcast %23 : vector<1x16xf32> to vector<24x16xf32>
    %25 = arith.addf %22, %24 : vector<24x16xf32>
    %cst_15 = arith.constant 0.000000e+00 : f32
    %26 = vector.broadcast %cst_15 : f32 to vector<24x16xf32>
    %27 = arith.maximumf %25, %26 : vector<24x16xf32>
    %c152 = arith.constant 152 : index
    %c0_16 = arith.constant 0 : index
    %28 = vector.load %arg1[%c152, %c0_16] : memref<528x64xf32, #tpu.memory_space<vmem>>, vector<16x32xf32>
    %cst_17 = arith.constant dense<0.000000e+00> : vector<24x32xf32>
    %29 = tpu.matmul %27, %28, %cst_17 {dimension_numbers = #tpu.dot_dimension_numbers<[1], [0], [0], [1], [0, 0, 1, 1], [], []>} : vector<24x16xf32>, vector<16x32xf32>, vector<24x32xf32> -> vector<24x32xf32>
    %c168 = arith.constant 168 : index
    %c0_18 = arith.constant 0 : index
    %30 = vector.load %arg1[%c168, %c0_18] : memref<528x64xf32, #tpu.memory_space<vmem>>, vector<1x32xf32>
    %31 = vector.broadcast %30 : vector<1x32xf32> to vector<24x32xf32>
    %32 = arith.addf %29, %31 : vector<24x32xf32>
    %cst_19 = arith.constant 0.000000e+00 : f32
    %33 = vector.broadcast %cst_19 : f32 to vector<24x32xf32>
    %34 = arith.maximumf %32, %33 : vector<24x32xf32>
    %35 = vector.extract_strided_slice %34 {offsets = [0, 0], sizes = [8, 32], strides = [1, 1]} : vector<24x32xf32> to vector<8x32xf32>
    %c176 = arith.constant 176 : index
    %c0_20 = arith.constant 0 : index
    %36 = vector.load %arg1[%c176, %c0_20] : memref<528x64xf32, #tpu.memory_space<vmem>>, vector<32x64xf32>
    %cst_21 = arith.constant dense<0.000000e+00> : vector<8x64xf32>
    %37 = tpu.matmul %35, %36, %cst_21 {dimension_numbers = #tpu.dot_dimension_numbers<[1], [0], [0], [1], [0, 0, 1, 1], [], []>} : vector<8x32xf32>, vector<32x64xf32>, vector<8x64xf32> -> vector<8x64xf32>
    %c208 = arith.constant 208 : index
    %c0_22 = arith.constant 0 : index
    %38 = vector.load %arg1[%c208, %c0_22] : memref<528x64xf32, #tpu.memory_space<vmem>>, vector<1x64xf32>
    %39 = vector.broadcast %38 : vector<1x64xf32> to vector<8x64xf32>
    %40 = arith.addf %37, %39 : vector<8x64xf32>
    %41 = math.exp %40 : vector<8x64xf32>
    %cst_23 = arith.constant 9.99999974E-6 : f32
    %cst_24 = arith.constant 1.000000e+06 : f32
    %42 = vector.broadcast %cst_23 : f32 to vector<8x64xf32>
    %43 = arith.maximumf %42, %41 : vector<8x64xf32>
    %44 = vector.broadcast %cst_24 : f32 to vector<8x64xf32>
    %45 = arith.minimumf %44, %43 : vector<8x64xf32>
    %c0_25 = arith.constant 0 : index
    %c0_26 = arith.constant 0 : index
    %46 = vector.load %arg2[%c0_25, %c0_26] : memref<8x352xf32, #tpu.memory_space<vmem>>, vector<8x64xf32>
    tpu.vector_store %arg2[%c0_25, %c0_26], %45 {strides = array<i32>} : memref<8x352xf32, #tpu.memory_space<vmem>>, vector<8x64xf32>,
    %47 = vector.extract_strided_slice %34 {offsets = [8, 0], sizes = [8, 32], strides = [1, 1]} : vector<24x32xf32> to vector<8x32xf32>
    %c216 = arith.constant 216 : index
    %c0_27 = arith.constant 0 : index
    %48 = vector.load %arg1[%c216, %c0_27] : memref<528x64xf32, #tpu.memory_space<vmem>>, vector<32x64xf32>
    %cst_28 = arith.constant dense<0.000000e+00> : vector<8x64xf32>
    %49 = tpu.matmul %47, %48, %cst_28 {dimension_numbers = #tpu.dot_dimension_numbers<[1], [0], [0], [1], [0, 0, 1, 1], [], []>} : vector<8x32xf32>, vector<32x64xf32>, vector<8x64xf32> -> vector<8x64xf32>
    %c248 = arith.constant 248 : index
    %c0_29 = arith.constant 0 : index
    %50 = vector.load %arg1[%c248, %c0_29] : memref<528x64xf32, #tpu.memory_space<vmem>>, vector<1x64xf32>
    %51 = vector.broadcast %50 : vector<1x64xf32> to vector<8x64xf32>
    %52 = arith.addf %49, %51 : vector<8x64xf32>
    %cst_30 = arith.constant 0.000000e+00 : f32
    %53 = vector.broadcast %cst_30 : f32 to vector<8x64xf32>
    %54 = arith.maximumf %52, %53 : vector<8x64xf32>
    %55 = vector.broadcast %cst_30 : f32 to vector<8x64xf32>
    %56 = arith.subf %52, %55 : vector<8x64xf32>
    %57 = arith.cmpf one, %56, %56 : vector<8x64xf32>
    %58 = vector.broadcast %cst_30 : f32 to vector<8x64xf32>
    %59 = arith.addf %52, %58 : vector<8x64xf32>
    %60 = math.absf %56 : vector<8x64xf32>
    %cst_31 = arith.constant 0.000000e+00 : f32
    %61 = vector.broadcast %cst_31 : f32 to vector<8x64xf32>
    %62 = arith.subf %61, %60 : vector<8x64xf32>
    %63 = math.exp %62 : vector<8x64xf32>
    %64 = math.log1p %63 : vector<8x64xf32>
    %65 = arith.addf %54, %64 : vector<8x64xf32>
    %66 = arith.select %57, %59, %65 : vector<8x64xi1>, vector<8x64xf32>
    %cst_32 = arith.constant 9.99999974E-5 : f32
    %cst_33 = arith.constant 1.000000e+04 : f32
    %67 = vector.broadcast %cst_32 : f32 to vector<8x64xf32>
    %68 = arith.maximumf %67, %66 : vector<8x64xf32>
    %69 = vector.broadcast %cst_33 : f32 to vector<8x64xf32>
    %70 = arith.minimumf %69, %68 : vector<8x64xf32>
    %c0_34 = arith.constant 0 : index
    %c64_35 = arith.constant 64 : index
    %71 = vector.load %arg2[%c0_34, %c64_35] : memref<8x352xf32, #tpu.memory_space<vmem>>, vector<8x64xf32>
    tpu.vector_store %arg2[%c0_34, %c64_35], %70 {strides = array<i32>} : memref<8x352xf32, #tpu.memory_space<vmem>>, vector<8x64xf32>,
    %72 = vector.extract_strided_slice %34 {offsets = [16, 0], sizes = [8, 32], strides = [1, 1]} : vector<24x32xf32> to vector<8x32xf32>
    %c256 = arith.constant 256 : index
    %c0_36 = arith.constant 0 : index
    %73 = vector.load %arg1[%c256, %c0_36] : memref<528x64xf32, #tpu.memory_space<vmem>>, vector<32x64xf32>
    %cst_37 = arith.constant dense<0.000000e+00> : vector<8x64xf32>
    %74 = tpu.matmul %72, %73, %cst_37 {dimension_numbers = #tpu.dot_dimension_numbers<[1], [0], [0], [1], [0, 0, 1, 1], [], []>} : vector<8x32xf32>, vector<32x64xf32>, vector<8x64xf32> -> vector<8x64xf32>
    %c288 = arith.constant 288 : index
    %c0_38 = arith.constant 0 : index
    %75 = vector.load %arg1[%c288, %c0_38] : memref<528x64xf32, #tpu.memory_space<vmem>>, vector<1x64xf32>
    %76 = vector.broadcast %75 : vector<1x64xf32> to vector<8x64xf32>
    %77 = arith.addf %74, %76 : vector<8x64xf32>
    %78 = arith.negf %77 : vector<8x64xf32>
    %79 = math.exp %78 : vector<8x64xf32>
    %cst_39 = arith.constant 1.000000e+00 : f32
    %80 = vector.broadcast %cst_39 : f32 to vector<8x64xf32>
    %81 = arith.addf %80, %79 : vector<8x64xf32>
    %82 = arith.divf %80, %81 : vector<8x64xf32>
    %c0_40 = arith.constant 0 : index
    %c128_41 = arith.constant 128 : index
    %83 = vector.load %arg2[%c0_40, %c128_41] : memref<8x352xf32, #tpu.memory_space<vmem>>, vector<8x64xf32>
    tpu.vector_store %arg2[%c0_40, %c128_41], %82 {strides = array<i32>} : memref<8x352xf32, #tpu.memory_space<vmem>>, vector<8x64xf32>,
    %84 = vector.extract_strided_slice %19 {offsets = [0, 0], sizes = [8, 8], strides = [1, 1]} : vector<32x8xf32> to vector<8x8xf32>
    %c0_42 = arith.constant 0 : index
    %c192 = arith.constant 192 : index
    %85 = vector.load %arg2[%c0_42, %c192] : memref<8x352xf32, #tpu.memory_space<vmem>>, vector<8x8xf32>
    tpu.vector_store %arg2[%c0_42, %c192], %84 {strides = array<i32>} : memref<8x352xf32, #tpu.memory_space<vmem>>, vector<8x8xf32>,
    %c32 = arith.constant 32 : index
    %c0_43 = arith.constant 0 : index
    %86 = vector.load %arg0[%c32, %c0_43] : memref<64x64xf32, #tpu.memory_space<vmem>>, vector<32x48xf32>
    %c296 = arith.constant 296 : index
    %c0_44 = arith.constant 0 : index
    %87 = vector.load %arg1[%c296, %c0_44] : memref<528x64xf32, #tpu.memory_space<vmem>>, vector<48x32xf32>
    %cst_45 = arith.constant dense<0.000000e+00> : vector<32x32xf32>
    %88 = tpu.matmul %86, %87, %cst_45 {dimension_numbers = #tpu.dot_dimension_numbers<[1], [0], [0], [1], [0, 0, 1, 1], [], []>} : vector<32x48xf32>, vector<48x32xf32>, vector<32x32xf32> -> vector<32x32xf32>
    %c344 = arith.constant 344 : index
    %c0_46 = arith.constant 0 : index
    %89 = vector.load %arg1[%c344, %c0_46] : memref<528x64xf32, #tpu.memory_space<vmem>>, vector<1x32xf32>
    %90 = vector.broadcast %89 : vector<1x32xf32> to vector<32x32xf32>
    %91 = arith.addf %88, %90 : vector<32x32xf32>
    %cst_47 = arith.constant 0.000000e+00 : f32
    %92 = vector.broadcast %cst_47 : f32 to vector<32x32xf32>
    %93 = arith.maximumf %91, %92 : vector<32x32xf32>
    %c352 = arith.constant 352 : index
    %c0_48 = arith.constant 0 : index
    %94 = vector.load %arg1[%c352, %c0_48] : memref<528x64xf32, #tpu.memory_space<vmem>>, vector<32x8xf32>
    %cst_49 = arith.constant dense<0.000000e+00> : vector<32x8xf32>
    %95 = tpu.matmul %93, %94, %cst_49 {dimension_numbers = #tpu.dot_dimension_numbers<[1], [0], [0], [1], [0, 0, 1, 1], [], []>} : vector<32x32xf32>, vector<32x8xf32>, vector<32x8xf32> -> vector<32x8xf32>
    %c384 = arith.constant 384 : index
    %c0_50 = arith.constant 0 : index
    %96 = vector.load %arg1[%c384, %c0_50] : memref<528x64xf32, #tpu.memory_space<vmem>>, vector<1x8xf32>
    %97 = vector.broadcast %96 : vector<1x8xf32> to vector<32x8xf32>
    %98 = arith.addf %95, %97 : vector<32x8xf32>
    %99 = vector.extract_strided_slice %98 {offsets = [8, 0], sizes = [24, 8], strides = [1, 1]} : vector<32x8xf32> to vector<24x8xf32>
    %c392 = arith.constant 392 : index
    %c0_51 = arith.constant 0 : index
    %100 = vector.load %arg1[%c392, %c0_51] : memref<528x64xf32, #tpu.memory_space<vmem>>, vector<8x32xf32>
    %cst_52 = arith.constant dense<0.000000e+00> : vector<24x32xf32>
    %101 = tpu.matmul %99, %100, %cst_52 {dimension_numbers = #tpu.dot_dimension_numbers<[1], [0], [0], [1], [0, 0, 1, 1], [], []>} : vector<24x8xf32>, vector<8x32xf32>, vector<24x32xf32> -> vector<24x32xf32>
    %c400 = arith.constant 400 : index
    %c0_53 = arith.constant 0 : index
    %102 = vector.load %arg1[%c400, %c0_53] : memref<528x64xf32, #tpu.memory_space<vmem>>, vector<1x32xf32>
    %103 = vector.broadcast %102 : vector<1x32xf32> to vector<24x32xf32>
    %104 = arith.addf %101, %103 : vector<24x32xf32>
    %cst_54 = arith.constant 0.000000e+00 : f32
    %105 = vector.broadcast %cst_54 : f32 to vector<24x32xf32>
    %106 = arith.maximumf %104, %105 : vector<24x32xf32>
    %107 = vector.extract_strided_slice %106 {offsets = [0, 0], sizes = [8, 32], strides = [1, 1]} : vector<24x32xf32> to vector<8x32xf32>
    %c408 = arith.constant 408 : index
    %c0_55 = arith.constant 0 : index
    %108 = vector.load %arg1[%c408, %c0_55] : memref<528x64xf32, #tpu.memory_space<vmem>>, vector<32x48xf32>
    %cst_56 = arith.constant dense<0.000000e+00> : vector<8x48xf32>
    %109 = tpu.matmul %107, %108, %cst_56 {dimension_numbers = #tpu.dot_dimension_numbers<[1], [0], [0], [1], [0, 0, 1, 1], [], []>} : vector<8x32xf32>, vector<32x48xf32>, vector<8x48xf32> -> vector<8x48xf32>
    %c440 = arith.constant 440 : index
    %c0_57 = arith.constant 0 : index
    %110 = vector.load %arg1[%c440, %c0_57] : memref<528x64xf32, #tpu.memory_space<vmem>>, vector<1x48xf32>
    %111 = vector.broadcast %110 : vector<1x48xf32> to vector<8x48xf32>
    %112 = arith.addf %109, %111 : vector<8x48xf32>
    %113 = math.exp %112 : vector<8x48xf32>
    %cst_58 = arith.constant 9.99999974E-6 : f32
    %cst_59 = arith.constant 1.000000e+06 : f32
    %114 = vector.broadcast %cst_58 : f32 to vector<8x48xf32>
    %115 = arith.maximumf %114, %113 : vector<8x48xf32>
    %116 = vector.broadcast %cst_59 : f32 to vector<8x48xf32>
    %117 = arith.minimumf %116, %115 : vector<8x48xf32>
    %c0_60 = arith.constant 0 : index
    %c200 = arith.constant 200 : index
    %118 = vector.load %arg2[%c0_60, %c200] : memref<8x352xf32, #tpu.memory_space<vmem>>, vector<8x48xf32>
    tpu.vector_store %arg2[%c0_60, %c200], %117 {strides = array<i32>} : memref<8x352xf32, #tpu.memory_space<vmem>>, vector<8x48xf32>,
    %119 = vector.extract_strided_slice %106 {offsets = [8, 0], sizes = [8, 32], strides = [1, 1]} : vector<24x32xf32> to vector<8x32xf32>
    %c448 = arith.constant 448 : index
    %c0_61 = arith.constant 0 : index
    %120 = vector.load %arg1[%c448, %c0_61] : memref<528x64xf32, #tpu.memory_space<vmem>>, vector<32x48xf32>
    %cst_62 = arith.constant dense<0.000000e+00> : vector<8x48xf32>
    %121 = tpu.matmul %119, %120, %cst_62 {dimension_numbers = #tpu.dot_dimension_numbers<[1], [0], [0], [1], [0, 0, 1, 1], [], []>} : vector<8x32xf32>, vector<32x48xf32>, vector<8x48xf32> -> vector<8x48xf32>
    %c480 = arith.constant 480 : index
    %c0_63 = arith.constant 0 : index
    %122 = vector.load %arg1[%c480, %c0_63] : memref<528x64xf32, #tpu.memory_space<vmem>>, vector<1x48xf32>
    %123 = vector.broadcast %122 : vector<1x48xf32> to vector<8x48xf32>
    %124 = arith.addf %121, %123 : vector<8x48xf32>
    %cst_64 = arith.constant 0.000000e+00 : f32
    %125 = vector.broadcast %cst_64 : f32 to vector<8x48xf32>
    %126 = arith.maximumf %124, %125 : vector<8x48xf32>
    %127 = vector.broadcast %cst_64 : f32 to vector<8x48xf32>
    %128 = arith.subf %124, %127 : vector<8x48xf32>
    %129 = arith.cmpf one, %128, %128 : vector<8x48xf32>
    %130 = vector.broadcast %cst_64 : f32 to vector<8x48xf32>
    %131 = arith.addf %124, %130 : vector<8x48xf32>
    %132 = math.absf %128 : vector<8x48xf32>
    %cst_65 = arith.constant 0.000000e+00 : f32
    %133 = vector.broadcast %cst_65 : f32 to vector<8x48xf32>
    %134 = arith.subf %133, %132 : vector<8x48xf32>
    %135 = math.exp %134 : vector<8x48xf32>
    %136 = math.log1p %135 : vector<8x48xf32>
    %137 = arith.addf %126, %136 : vector<8x48xf32>
    %138 = arith.select %129, %131, %137 : vector<8x48xi1>, vector<8x48xf32>
    %cst_66 = arith.constant 9.99999974E-5 : f32
    %cst_67 = arith.constant 1.000000e+04 : f32
    %139 = vector.broadcast %cst_66 : f32 to vector<8x48xf32>
    %140 = arith.maximumf %139, %138 : vector<8x48xf32>
    %141 = vector.broadcast %cst_67 : f32 to vector<8x48xf32>
    %142 = arith.minimumf %141, %140 : vector<8x48xf32>
    %c0_68 = arith.constant 0 : index
    %c248_69 = arith.constant 248 : index
    %143 = vector.load %arg2[%c0_68, %c248_69] : memref<8x352xf32, #tpu.memory_space<vmem>>, vector<8x48xf32>
    tpu.vector_store %arg2[%c0_68, %c248_69], %142 {strides = array<i32>} : memref<8x352xf32, #tpu.memory_space<vmem>>, vector<8x48xf32>,
    %144 = vector.extract_strided_slice %106 {offsets = [16, 0], sizes = [8, 32], strides = [1, 1]} : vector<24x32xf32> to vector<8x32xf32>
    %c488 = arith.constant 488 : index
    %c0_70 = arith.constant 0 : index
    %145 = vector.load %arg1[%c488, %c0_70] : memref<528x64xf32, #tpu.memory_space<vmem>>, vector<32x48xf32>
    %cst_71 = arith.constant dense<0.000000e+00> : vector<8x48xf32>
    %146 = tpu.matmul %144, %145, %cst_71 {dimension_numbers = #tpu.dot_dimension_numbers<[1], [0], [0], [1], [0, 0, 1, 1], [], []>} : vector<8x32xf32>, vector<32x48xf32>, vector<8x48xf32> -> vector<8x48xf32>
    %c520 = arith.constant 520 : index
    %c0_72 = arith.constant 0 : index
    %147 = vector.load %arg1[%c520, %c0_72] : memref<528x64xf32, #tpu.memory_space<vmem>>, vector<1x48xf32>
    %148 = vector.broadcast %147 : vector<1x48xf32> to vector<8x48xf32>
    %149 = arith.addf %146, %148 : vector<8x48xf32>
    %150 = arith.negf %149 : vector<8x48xf32>
    %151 = math.exp %150 : vector<8x48xf32>
    %cst_73 = arith.constant 1.000000e+00 : f32
    %152 = vector.broadcast %cst_73 : f32 to vector<8x48xf32>
    %153 = arith.addf %152, %151 : vector<8x48xf32>
    %154 = arith.divf %152, %153 : vector<8x48xf32>
    %c0_74 = arith.constant 0 : index
    %c296_75 = arith.constant 296 : index
    %155 = vector.load %arg2[%c0_74, %c296_75] : memref<8x352xf32, #tpu.memory_space<vmem>>, vector<8x48xf32>
    tpu.vector_store %arg2[%c0_74, %c296_75], %154 {strides = array<i32>} : memref<8x352xf32, #tpu.memory_space<vmem>>, vector<8x48xf32>,
    %156 = vector.extract_strided_slice %98 {offsets = [0, 0], sizes = [8, 8], strides = [1, 1]} : vector<32x8xf32> to vector<8x8xf32>
    %c0_76 = arith.constant 0 : index
    %c344_77 = arith.constant 344 : index
    %157 = vector.load %arg2[%c0_76, %c344_77] : memref<8x352xf32, #tpu.memory_space<vmem>>, vector<8x8xf32>
    tpu.vector_store %arg2[%c0_76, %c344_77], %156 {strides = array<i32>} : memref<8x352xf32, #tpu.memory_space<vmem>>, vector<8x8xf32>,
    return
  }
}

</mosaic_0001>

<llo_original>
// kernel: forward.1
$region0: #{forward.1}
  #allocation0 [shape = 'u32[]', space=smem, size = 0x4, offset = 0x4, fixed_abs, tag = 'smem constant byte address 0x4 - core index']
  #allocation1 [shape = 'u32[72,128]{1,0:T(1,128)}', space=vmem, size = 0x9000, scoped, tag = 'internal scratch']
  %s0 = inlined_call_operand.vmem [shape: f32[64,64], index: 0, kind: input, shape index: {}]
  %s1 = inlined_call_operand.vmem [shape: f32[528,64], index: 1, kind: input, shape index: {}]
  %s2 = inlined_call_operand.vmem [shape: f32[8,352], index: 2, kind: output, shape index: {}]
  %s3 = sld [smem:[#allocation0]]
  $region18: #{forward.1} parent=0
    _
  %s5 = ssub.s32 1, %s3
  %s6 = scalar_select 0, %s5, %s3
  // Predicated region
  $region2: #{forward.1} parent=0 // pred_check
    _
  $region3: #{forward.1} parent=0 // pred_check_branch
    %8 = sbr.rel (0) target = $region5
  $region4: #{forward.1} parent=0 // pred_region
    _
  $region5: #{forward.1} parent=0 // pred_fallthru
    _
  // Predicated region
  $region6: #{forward.1} parent=0 // pred_check
    _
  $region7: #{forward.1} parent=0 // pred_check_branch
    %10 = sbr.rel (0) target = $region9
  $region8: #{forward.1} parent=0 // pred_region
    _
  $region9: #{forward.1} parent=0 // pred_fallthru
    _
  %v11 = vld [vmem:[%s0] sm:$0xff]
  %v12 = vld [vmem:[%s0 + $0x8] sm:$0xff]
  %v13 = vld [vmem:[%s0 + $0x10] sm:$0xff]
  %v14 = vld [vmem:[%s0 + $0x18] sm:$0xff]
  %v15 = vld [vmem:[%s1] sm:$0xff]
  %v16 = vld [vmem:[%s1 + $0x8] sm:$0xff]
  %v17 = vld [vmem:[%s1 + $0x10] sm:$0xff]
  %v18 = vld [vmem:[%s1 + $0x18] sm:$0xff]
  %v19 = vld [vmem:[%s1 + $0x20] sm:$0xff]
  %v20 = vld [vmem:[%s1 + $0x28] sm:$0xff]
  %v21 = vld [vmem:[%s1 + $0x30] sm:$0xff]
  %v22 = vld [vmem:[%s1 + $0x38] sm:$0xff]
  %v23 = vld [vmem:[%s1 + $0x40] sm:$0x1]
  %v24 = vperm.slane %v23, 0
  %vm25 = vcmask 523264
  %v27 = vsel %vm25, %v11, 0
  %v30 = vsel %vm25, %v12, 0
  %v33 = vsel %vm25, %v13, 0
  %v36 = vsel %vm25, %v14, 0
  %38 = vmatpush.msra.mxu0 0.0
  %39 = vmatpush.msra.mxu0 0.0
  %40 = vmatpush.msra.mxu0 0.0
  %41 = vmatpush.msra.mxu0 0.0
  %42 = vmatpush.msra.mxu0 0.0
  %43 = vmatpush.msra.mxu0 0.0
  %44 = vmatpush.msra.mxu0 0.0
  %45 = vmatpush.msra.mxu0 0.0
  %46 = vmatpush.msra.mxu0 %v22
  %47 = vmatpush.msra.mxu0 %v21
  %48 = vmatpush.msra.mxu0 %v20
  %49 = vmatpush.msra.mxu0 %v19
  %50 = vmatpush.msra.mxu0 %v18
  %51 = vmatpush.msra.mxu0 %v17
  %52 = vmatpush.msra.mxu0 %v16
  %53 = vmatpush.msra.mxu0 %v15
  %54 = vmatmul.f32.gmra.mxu0 %v27
  %v55 = vpop.f32.mrf.mxu0
  %v56 = vadd.f32 %v24, %v55
  %57 = vmatmul.f32.gmra.mxu0 %v30
  %v58 = vpop.f32.mrf.mxu0
  %v59 = vadd.f32 %v24, %v58
  %60 = vmatmul.f32.gmra.mxu0 %v33
  %v61 = vpop.f32.mrf.mxu0
  %v62 = vadd.f32 %v24, %v61
  %63 = vmatmul.f32.gmra.mxu0 %v36
  %v64 = vpop.f32.mrf.mxu0
  %v65 = vadd.f32 %v24, %v64
  %66 = vdwg.mxu0
  %v67 = vmax.f32 %v56, 0.0
  %v68 = vmax.f32 %v59, 0.0
  %v69 = vmax.f32 %v62, 0.0
  %v70 = vmax.f32 %v65, 0.0
  %v71 = vld [vmem:[%s1 + $0x48] sm:$0xff]
  %v72 = vld [vmem:[%s1 + $0x50] sm:$0xff]
  %v73 = vld [vmem:[%s1 + $0x58] sm:$0xff]
  %v74 = vld [vmem:[%s1 + $0x60] sm:$0xff]
  %v75 = vld [vmem:[%s1 + $0x68] sm:$0x1]
  %v76 = vperm.slane %v75, 0
  %vm77 = vcmask 261120
  %v79 = vsel %vm77, %v67, 0
  %v82 = vsel %vm77, %v68, 0
  %v85 = vsel %vm77, %v69, 0
  %v88 = vsel %vm77, %v70, 0
  %90 = vmatpush.msra.mxu0 0.0
  %91 = vmatpush.msra.mxu0 0.0
  %92 = vmatpush.msra.mxu0 0.0
  %93 = vmatpush.msra.mxu0 0.0
  %94 = vmatpush.msra.mxu0 0.0
  %95 = vmatpush.msra.mxu0 0.0
  %96 = vmatpush.msra.mxu0 0.0
  %97 = vmatpush.msra.mxu0 0.0
  %98 = vmatpush.msra.mxu0 0.0
  %99 = vmatpush.msra.mxu0 0.0
  %100 = vmatpush.msra.mxu0 0.0
  %101 = vmatpush.msra.mxu0 0.0
  %102 = vmatpush.msra.mxu0 %v74
  %103 = vmatpush.msra.mxu0 %v73
  %104 = vmatpush.msra.mxu0 %v72
  %105 = vmatpush.msra.mxu0 %v71
  %106 = vmatmul.f32.gmra.mxu0 %v79
  %v107 = vpop.f32.mrf.mxu0
  %v108 = vadd.f32 %v76, %v107
  %109 = vmatmul.f32.gmra.mxu0 %v82
  %v110 = vpop.f32.mrf.mxu0
  %v111 = vadd.f32 %v76, %v110
  %112 = vmatmul.f32.gmra.mxu0 %v85
  %v113 = vpop.f32.mrf.mxu0
  %v114 = vadd.f32 %v76, %v113
  %115 = vmatmul.f32.gmra.mxu0 %v88
  %v116 = vpop.f32.mrf.mxu0
  %v117 = vadd.f32 %v76, %v116
  %118 = vdwg.mxu0
  %v119 = vmax.f32 %v108, 0.0
  %v120 = vmax.f32 %v111, 0.0
  %v121 = vmax.f32 %v114, 0.0
  %v122 = vmax.f32 %v117, 0.0
  %v123 = vld [vmem:[%s1 + $0x70] sm:$0xff]
  %v124 = vld [vmem:[%s1 + $0x78] sm:$0xff]
  %v125 = vld [vmem:[%s1 + $0x80] sm:$0x1]
  %v126 = vperm.slane %v125, 0
  %vm127 = vcmask 130048
  %v129 = vsel %vm127, %v119, 0
  %v132 = vsel %vm127, %v120, 0
  %v135 = vsel %vm127, %v121, 0
  %v138 = vsel %vm127, %v122, 0
  %140 = vmatpush.msra.mxu0 0.0
  %141 = vmatpush.msra.mxu0 0.0
  %142 = vmatpush.msra.mxu0 0.0
  %143 = vmatpush.msra.mxu0 0.0
  %144 = vmatpush.msra.mxu0 0.0
  %145 = vmatpush.msra.mxu0 0.0
  %146 = vmatpush.msra.mxu0 0.0
  %147 = vmatpush.msra.mxu0 0.0
  %148 = vmatpush.msra.mxu0 0.0
  %149 = vmatpush.msra.mxu0 0.0
  %150 = vmatpush.msra.mxu0 0.0
  %151 = vmatpush.msra.mxu0 0.0
  %152 = vmatpush.msra.mxu0 0.0
  %153 = vmatpush.msra.mxu0 0.0
  %154 = vmatpush.msra.mxu0 %v124
  %155 = vmatpush.msra.mxu0 %v123
  %156 = vmatmul.f32.gmra.mxu0 %v129
  %v157 = vpop.f32.mrf.mxu0
  %v158 = vadd.f32 %v126, %v157
  %159 = vmatmul.f32.gmra.mxu0 %v132
  %v160 = vpop.f32.mrf.mxu0
  %v161 = vadd.f32 %v126, %v160
  %162 = vmatmul.f32.gmra.mxu0 %v135
  %v163 = vpop.f32.mrf.mxu0
  %v164 = vadd.f32 %v126, %v163
  %165 = vmatmul.f32.gmra.mxu0 %v138
  %v166 = vpop.f32.mrf.mxu0
  %v167 = vadd.f32 %v126, %v166
  %168 = vdwg.mxu0
  %v169 = vld [vmem:[%s1 + $0x88] sm:$0xff]
  %v170 = vld [vmem:[%s1 + $0x90] sm:$0x1]
  %v171 = vperm.slane %v170, 0
  %vm172 = vcmask 64512
  %v174 = vsel %vm172, %v161, 0
  %v177 = vsel %vm172, %v164, 0
  %v180 = vsel %vm172, %v167, 0
  %182 = vmatpush.msra.mxu0 0.0
  %183 = vmatpush.msra.mxu0 0.0
  %184 = vmatpush.msra.mxu0 0.0
  %185 = vmatpush.msra.mxu0 0.0
  %186 = vmatpush.msra.mxu0 0.0
  %187 = vmatpush.msra.mxu0 0.0
  %188 = vmatpush.msra.mxu0 0.0
  %189 = vmatpush.msra.mxu0 0.0
  %190 = vmatpush.msra.mxu0 0.0
  %191 = vmatpush.msra.mxu0 0.0
  %192 = vmatpush.msra.mxu0 0.0
  %193 = vmatpush.msra.mxu0 0.0
  %194 = vmatpush.msra.mxu0 0.0
  %195 = vmatpush.msra.mxu0 0.0
  %196 = vmatpush.msra.mxu0 0.0
  %197 = vmatpush.msra.mxu0 %v169
  %198 = vmatmul.f32.gmra.mxu0 %v174
  %v199 = vpop.f32.mrf.mxu0
  %v200 = vadd.f32 %v171, %v199
  %201 = vmatmul.f32.gmra.mxu0 %v177
  %v202 = vpop.f32.mrf.mxu0
  %v203 = vadd.f32 %v171, %v202
  %204 = vmatmul.f32.gmra.mxu0 %v180
  %v205 = vpop.f32.mrf.mxu0
  %v206 = vadd.f32 %v171, %v205
  %207 = vdwg.mxu0
  %v208 = vmax.f32 %v200, 0.0
  %v209 = vmax.f32 %v203, 0.0
  %v210 = vmax.f32 %v206, 0.0
  %v211 = vld [vmem:[%s1 + $0x98] sm:$0xff]
  %v212 = vld [vmem:[%s1 + $0xa0] sm:$0xff]
  %v213 = vld [vmem:[%s1 + $0xa8] sm:$0x1]
  %v214 = vperm.slane %v213, 0
  %v216 = vsel %vm127, %v208, 0
  %v219 = vsel %vm127, %v209, 0
  %v222 = vsel %vm127, %v210, 0
  %224 = vmatpush.msra.mxu0 0.0
  %225 = vmatpush.msra.mxu0 0.0
  %226 = vmatpush.msra.mxu0 0.0
  %227 = vmatpush.msra.mxu0 0.0
  %228 = vmatpush.msra.mxu0 0.0
  %229 = vmatpush.msra.mxu0 0.0
  %230 = vmatpush.msra.mxu0 0.0
  %231 = vmatpush.msra.mxu0 0.0
  %232 = vmatpush.msra.mxu0 0.0
  %233 = vmatpush.msra.mxu0 0.0
  %234 = vmatpush.msra.mxu0 0.0
  %235 = vmatpush.msra.mxu0 0.0
  %236 = vmatpush.msra.mxu0 0.0
  %237 = vmatpush.msra.mxu0 0.0
  %238 = vmatpush.msra.mxu0 %v212
  %239 = vmatpush.msra.mxu0 %v211
  %240 = vmatmul.f32.gmra.mxu0 %v216
  %v241 = vpop.f32.mrf.mxu0
  %v242 = vadd.f32 %v214, %v241
  %243 = vmatmul.f32.gmra.mxu0 %v219
  %v244 = vpop.f32.mrf.mxu0
  %v245 = vadd.f32 %v214, %v244
  %246 = vmatmul.f32.gmra.mxu0 %v222
  %v247 = vpop.f32.mrf.mxu0
  %v248 = vadd.f32 %v214, %v247
  %249 = vdwg.mxu0
  %v250 = vmax.f32 %v242, 0.0
  %v251 = vmax.f32 %v245, 0.0
  %v252 = vmax.f32 %v248, 0.0
  %v253 = vld [vmem:[%s1 + $0xb0] sm:$0xff]
  %v254 = vld [vmem:[%s1 + $0xb8] sm:$0xff]
  %v255 = vld [vmem:[%s1 + $0xc0] sm:$0xff]
  %v256 = vld [vmem:[%s1 + $0xc8] sm:$0xff]
  %v257 = vld [vmem:[%s1 + $0xd0] sm:$0x1]
  %v258 = vperm.slane %v257, 0
  %v260 = vsel %vm77, %v250, 0
  %262 = vmatpush.msra.mxu0 0.0
  %263 = vmatpush.msra.mxu0 0.0
  %264 = vmatpush.msra.mxu0 0.0
  %265 = vmatpush.msra.mxu0 0.0
  %266 = vmatpush.msra.mxu0 0.0
  %267 = vmatpush.msra.mxu0 0.0
  %268 = vmatpush.msra.mxu0 0.0
  %269 = vmatpush.msra.mxu0 0.0
  %270 = vmatpush.msra.mxu0 0.0
  %271 = vmatpush.msra.mxu0 0.0
  %272 = vmatpush.msra.mxu0 0.0
  %273 = vmatpush.msra.mxu0 0.0
  %274 = vmatpush.msra.mxu0 %v256
  %275 = vmatpush.msra.mxu0 %v255
  %276 = vmatpush.msra.mxu0 %v254
  %277 = vmatpush.msra.mxu0 %v253
  %278 = vmatmul.f32.gmra.mxu0 %v260
  %v279 = vpop.f32.mrf.mxu0
  %v280 = vadd.f32 %v258, %v279
  %281 = vdwg.mxu0
  %v282 = vmul.f32 %v280, 1.442695
  %v283 = vpow.pop %v282
  %v284 = vmax.f32 %v283, 1e-05
  %v285 = vmin.f32 %v284, 1000000.0
  %286 = vst.msk [vmem:[%s2] sm:$0xff] %vm25, %v285
  %v287 = vld [vmem:[%s1 + $0xd8] sm:$0xff]
  %v288 = vld [vmem:[%s1 + $0xe0] sm:$0xff]
  %v289 = vld [vmem:[%s1 + $0xe8] sm:$0xff]
  %v290 = vld [vmem:[%s1 + $0xf0] sm:$0xff]
  %v291 = vld [vmem:[%s1 + $0xf8] sm:$0x1]
  %v292 = vperm.slane %v291, 0
  %v294 = vsel %vm77, %v251, 0
  %296 = vmatpush.msra.mxu0 0.0
  %297 = vmatpush.msra.mxu0 0.0
  %298 = vmatpush.msra.mxu0 0.0
  %299 = vmatpush.msra.mxu0 0.0
  %300 = vmatpush.msra.mxu0 0.0
  %301 = vmatpush.msra.mxu0 0.0
  %302 = vmatpush.msra.mxu0 0.0
  %303 = vmatpush.msra.mxu0 0.0
  %304 = vmatpush.msra.mxu0 0.0
  %305 = vmatpush.msra.mxu0 0.0
  %306 = vmatpush.msra.mxu0 0.0
  %307 = vmatpush.msra.mxu0 0.0
  %308 = vmatpush.msra.mxu0 %v290
  %309 = vmatpush.msra.mxu0 %v289
  %310 = vmatpush.msra.mxu0 %v288
  %311 = vmatpush.msra.mxu0 %v287
  %312 = vmatmul.f32.gmra.mxu0 %v294
  %v313 = vpop.f32.mrf.mxu0
  %v314 = vadd.f32 %v292, %v313
  %315 = vdwg.mxu0
  %v316 = vmax.f32 %v314, 0.0
  %vm317 = vcmp.ne.f32.partialorder %v314, %v314
  %v318 = vadd.f32 %v314, 0.0
  %v319 = vand.u32 2147483647, %v314
  %v320 = vsub.f32 0.0, %v319
  %v321 = vmul.f32 %v320, 1.442695
  %v322 = vpow.pop %v321
  %v323 = vadd.f32 %v322, 1.0
  %v324 = vlog2.pop %v323
  %v325 = vmul.f32 %v324, 0.6931472
  %v326 = vmul.f32 -0.5, %v322
  %v327 = vadd.f32 %v326, 1.0
  %v328 = vmul.f32 %v327, %v322
  %v329 = vand.u32 2147483647, %v322
  %vm330 = vcmp.lt.f32.partialorder %v329, 0.0004427343
  %v331 = vsel %vm330, %v328, %v325
  %v332 = vadd.f32 %v316, %v331
  %v333 = vsel %vm317, %v318, %v332
  %v334 = vmax.f32 %v333, 0.0001
  %v335 = vmin.f32 %v334, 10000.0
  %337 = vrot.lane.b32.xlu0 %v335, 64
  %v338 = vpop.permute.xlu0 %337
  %vm340 = vcmask 1048064
  %341 = vst.msk [vmem:[%s2] sm:$0xff] %vm340, %v338
  %v342 = vld [vmem:[%s1 + $0x100] sm:$0xff]
  %v343 = vld [vmem:[%s1 + $0x108] sm:$0xff]
  %v344 = vld [vmem:[%s1 + $0x110] sm:$0xff]
  %v345 = vld [vmem:[%s1 + $0x118] sm:$0xff]
  %v346 = vld [vmem:[%s1 + $0x120] sm:$0x1]
  %v347 = vperm.slane %v346, 0
  %v349 = vsel %vm77, %v252, 0
  %351 = vmatpush.msra.mxu0 0.0
  %352 = vmatpush.msra.mxu0 0.0
  %353 = vmatpush.msra.mxu0 0.0
  %354 = vmatpush.msra.mxu0 0.0
  %355 = vmatpush.msra.mxu0 0.0
  %356 = vmatpush.msra.mxu0 0.0
  %357 = vmatpush.msra.mxu0 0.0
  %358 = vmatpush.msra.mxu0 0.0
  %359 = vmatpush.msra.mxu0 0.0
  %360 = vmatpush.msra.mxu0 0.0
  %361 = vmatpush.msra.mxu0 0.0
  %362 = vmatpush.msra.mxu0 0.0
  %363 = vmatpush.msra.mxu0 %v345
  %364 = vmatpush.msra.mxu0 %v344
  %365 = vmatpush.msra.mxu0 %v343
  %366 = vmatpush.msra.mxu0 %v342
  %367 = vmatmul.f32.gmra.mxu0 %v349
  %v368 = vpop.f32.mrf.mxu0
  %v369 = vadd.f32 %v347, %v368
  %370 = vdwg.mxu0
  %v371 = vxor.u32 %v369, 2147483648
  %v372 = vmul.f32 %v371, 1.442695
  %v373 = vpow.pop %v372
  %v374 = vadd.f32 %v373, 1.0
  %v375 = vrcp.pop %v374
  %v376 = vmul.f32 %v374, %v375
  %v377 = vsub.f32 1.0, %v376
  %v378 = vmul.f32 %v375, %v377
  %v379 = vadd.f32 %v375, %v378
  %vm380 = vweird.f32 %v374
  %vm381 = vweird.f32 %v375
  %vm382 = vmor %vm380, %vm381
  %v383 = vsel %vm382, %v375, %v379
  %v384 = vand.u32 2147483647, %v374
  %vm385 = vcmp.eq.f32.partialorder %v384, 8.507059e+37
  %v386 = vand.u32 %v374, 2147483648
  %v387 = vor.u32 1.1754944e-38, %v386
  %v388 = vsel %vm385, %v387, %v383
  %v389 = vmul.f32 1.0, %v388
  %390 = vst.msk [vmem:[%s2 + $0x8] sm:$0xff] %vm25, %v389
  %392 = vrot.lane.b32.xlu0 %v158, 64
  %v393 = vpop.permute.xlu0 %392
  %vm395 = vcmask 589312
  %396 = vst.msk [vmem:[%s2 + $0x8] sm:$0xff] %vm395, %v393
  %v397 = vld [vmem:[%s0 + $0x20] sm:$0xff]
  %v398 = vld [vmem:[%s0 + $0x28] sm:$0xff]
  %v399 = vld [vmem:[%s0 + $0x30] sm:$0xff]
  %v400 = vld [vmem:[%s0 + $0x38] sm:$0xff]
  %v401 = vld [vmem:[%s1 + $0x128] sm:$0xff]
  %v402 = vld [vmem:[%s1 + $0x130] sm:$0xff]
  %v403 = vld [vmem:[%s1 + $0x138] sm:$0xff]
  %v404 = vld [vmem:[%s1 + $0x140] sm:$0xff]
  %v405 = vld [vmem:[%s1 + $0x148] sm:$0xff]
  %v406 = vld [vmem:[%s1 + $0x150] sm:$0xff]
  %v407 = vld [vmem:[%s1 + $0x158] sm:$0x1]
  %v408 = vperm.slane %v407, 0
  %vm409 = vcmask 392192
  %v411 = vsel %vm409, %v397, 0
  %v414 = vsel %vm409, %v398, 0
  %v417 = vsel %vm409, %v399, 0
  %v420 = vsel %vm409, %v400, 0
  %422 = vmatpush.msra.mxu0 0.0
  %423 = vmatpush.msra.mxu0 0.0
  %424 = vmatpush.msra.mxu0 0.0
  %425 = vmatpush.msra.mxu0 0.0
  %426 = vmatpush.msra.mxu0 0.0
  %427 = vmatpush.msra.mxu0 0.0
  %428 = vmatpush.msra.mxu0 0.0
  %429 = vmatpush.msra.mxu0 0.0
  %430 = vmatpush.msra.mxu0 0.0
  %431 = vmatpush.msra.mxu0 0.0
  %432 = vmatpush.msra.mxu0 %v406
  %433 = vmatpush.msra.mxu0 %v405
  %434 = vmatpush.msra.mxu0 %v404
  %435 = vmatpush.msra.mxu0 %v403
  %436 = vmatpush.msra.mxu0 %v402
  %437 = vmatpush.msra.mxu0 %v401
  %438 = vmatmul.f32.gmra.mxu0 %v411
  %v439 = vpop.f32.mrf.mxu0
  %v440 = vadd.f32 %v408, %v439
  %441 = vmatmul.f32.gmra.mxu0 %v414
  %v442 = vpop.f32.mrf.mxu0
  %v443 = vadd.f32 %v408, %v442
  %444 = vmatmul.f32.gmra.mxu0 %v417
  %v445 = vpop.f32.mrf.mxu0
  %v446 = vadd.f32 %v408, %v445
  %447 = vmatmul.f32.gmra.mxu0 %v420
  %v448 = vpop.f32.mrf.mxu0
  %v449 = vadd.f32 %v408, %v448
  %450 = vdwg.mxu0
  %v451 = vmax.f32 %v440, 0.0
  %v452 = vmax.f32 %v443, 0.0
  %v453 = vmax.f32 %v446, 0.0
  %v454 = vmax.f32 %v449, 0.0
  %v455 = vld [vmem:[%s1 + $0x160] sm:$0xff]
  %v456 = vld [vmem:[%s1 + $0x168] sm:$0xff]
  %v457 = vld [vmem:[%s1 + $0x170] sm:$0xff]
  %v458 = vld [vmem:[%s1 + $0x178] sm:$0xff]
  %v459 = vld [vmem:[%s1 + $0x180] sm:$0x1]
  %v460 = vperm.slane %v459, 0
  %v462 = vsel %vm77, %v451, 0
  %v465 = vsel %vm77, %v452, 0
  %v468 = vsel %vm77, %v453, 0
  %v471 = vsel %vm77, %v454, 0
  %473 = vmatpush.msra.mxu0 0.0
  %474 = vmatpush.msra.mxu0 0.0
  %475 = vmatpush.msra.mxu0 0.0
  %476 = vmatpush.msra.mxu0 0.0
  %477 = vmatpush.msra.mxu0 0.0
  %478 = vmatpush.msra.mxu0 0.0
  %479 = vmatpush.msra.mxu0 0.0
  %480 = vmatpush.msra.mxu0 0.0
  %481 = vmatpush.msra.mxu0 0.0
  %482 = vmatpush.msra.mxu0 0.0
  %483 = vmatpush.msra.mxu0 0.0
  %484 = vmatpush.msra.mxu0 0.0
  %485 = vmatpush.msra.mxu0 %v458
  %486 = vmatpush.msra.mxu0 %v457
  %487 = vmatpush.msra.mxu0 %v456
  %488 = vmatpush.msra.mxu0 %v455
  %489 = vmatmul.f32.gmra.mxu0 %v462
  %v490 = vpop.f32.mrf.mxu0
  %v491 = vadd.f32 %v460, %v490
  %492 = vmatmul.f32.gmra.mxu0 %v465
  %v493 = vpop.f32.mrf.mxu0
  %v494 = vadd.f32 %v460, %v493
  %495 = vmatmul.f32.gmra.mxu0 %v468
  %v496 = vpop.f32.mrf.mxu0
  %v497 = vadd.f32 %v460, %v496
  %498 = vmatmul.f32.gmra.mxu0 %v471
  %v499 = vpop.f32.mrf.mxu0
  %v500 = vadd.f32 %v460, %v499
  %501 = vdwg.mxu0
  %v502 = vld [vmem:[%s1 + $0x188] sm:$0xff]
  %v503 = vld [vmem:[%s1 + $0x190] sm:$0x1]
  %v504 = vperm.slane %v503, 0
  %v506 = vsel %vm172, %v494, 0
  %v509 = vsel %vm172, %v497, 0
  %v512 = vsel %vm172, %v500, 0
  %514 = vmatpush.msra.mxu0 0.0
  %515 = vmatpush.msra.mxu0 0.0
  %516 = vmatpush.msra.mxu0 0.0
  %517 = vmatpush.msra.mxu0 0.0
  %518 = vmatpush.msra.mxu0 0.0
  %519 = vmatpush.msra.mxu0 0.0
  %520 = vmatpush.msra.mxu0 0.0
  %521 = vmatpush.msra.mxu0 0.0
  %522 = vmatpush.msra.mxu0 0.0
  %523 = vmatpush.msra.mxu0 0.0
  %524 = vmatpush.msra.mxu0 0.0
  %525 = vmatpush.msra.mxu0 0.0
  %526 = vmatpush.msra.mxu0 0.0
  %527 = vmatpush.msra.mxu0 0.0
  %528 = vmatpush.msra.mxu0 0.0
  %529 = vmatpush.msra.mxu0 %v502
  %530 = vmatmul.f32.gmra.mxu0 %v506
  %v531 = vpop.f32.mrf.mxu0
  %v532 = vadd.f32 %v504, %v531
  %533 = vmatmul.f32.gmra.mxu0 %v509
  %v534 = vpop.f32.mrf.mxu0
  %v535 = vadd.f32 %v504, %v534
  %536 = vmatmul.f32.gmra.mxu0 %v512
  %v537 = vpop.f32.mrf.mxu0
  %v538 = vadd.f32 %v504, %v537
  %539 = vdwg.mxu0
  %v540 = vmax.f32 %v532, 0.0
  %v541 = vmax.f32 %v535, 0.0
  %v542 = vmax.f32 %v538, 0.0
  %v543 = vld [vmem:[%s1 + $0x198] sm:$0xff]
  %v544 = vld [vmem:[%s1 + $0x1a0] sm:$0xff]
  %v545 = vld [vmem:[%s1 + $0x1a8] sm:$0xff]
  %v546 = vld [vmem:[%s1 + $0x1b0] sm:$0xff]
  %v547 = vld [vmem:[%s1 + $0x1b8] sm:$0x1]
  %v548 = vperm.slane %v547, 0
  %v550 = vsel %vm77, %v540, 0
  %552 = vmatpush.msra.mxu0 0.0
  %553 = vmatpush.msra.mxu0 0.0
  %554 = vmatpush.msra.mxu0 0.0
  %555 = vmatpush.msra.mxu0 0.0
  %556 = vmatpush.msra.mxu0 0.0
  %557 = vmatpush.msra.mxu0 0.0
  %558 = vmatpush.msra.mxu0 0.0
  %559 = vmatpush.msra.mxu0 0.0
  %560 = vmatpush.msra.mxu0 0.0
  %561 = vmatpush.msra.mxu0 0.0
  %562 = vmatpush.msra.mxu0 0.0
  %563 = vmatpush.msra.mxu0 0.0
  %564 = vmatpush.msra.mxu0 %v546
  %565 = vmatpush.msra.mxu0 %v545
  %566 = vmatpush.msra.mxu0 %v544
  %567 = vmatpush.msra.mxu0 %v543
  %568 = vmatmul.f32.gmra.mxu0 %v550
  %v569 = vpop.f32.mrf.mxu0
  %v570 = vadd.f32 %v548, %v569
  %571 = vdwg.mxu0
  %v572 = vmul.f32 %v570, 1.442695
  %v573 = vpow.pop %v572
  %v574 = vmax.f32 %v573, 1e-05
  %v575 = vmin.f32 %v574, 1000000.0
  %577 = vrot.lane.b32.xlu0 %v575, 72
  %v578 = vpop.permute.xlu0 %577
  %vm580 = vcmask 982592
  %581 = vst.msk [vmem:[%s2 + $0x8] sm:$0xff] %vm580, %v578
  %v582 = vld [vmem:[%s1 + $0x1c0] sm:$0xff]
  %v583 = vld [vmem:[%s1 + $0x1c8] sm:$0xff]
  %v584 = vld [vmem:[%s1 + $0x1d0] sm:$0xff]
  %v585 = vld [vmem:[%s1 + $0x1d8] sm:$0xff]
  %v586 = vld [vmem:[%s1 + $0x1e0] sm:$0x1]
  %v587 = vperm.slane %v586, 0
  %v589 = vsel %vm77, %v541, 0
  %591 = vmatpush.msra.mxu0 0.0
  %592 = vmatpush.msra.mxu0 0.0
  %593 = vmatpush.msra.mxu0 0.0
  %594 = vmatpush.msra.mxu0 0.0
  %595 = vmatpush.msra.mxu0 0.0
  %596 = vmatpush.msra.mxu0 0.0
  %597 = vmatpush.msra.mxu0 0.0
  %598 = vmatpush.msra.mxu0 0.0
  %599 = vmatpush.msra.mxu0 0.0
  %600 = vmatpush.msra.mxu0 0.0
  %601 = vmatpush.msra.mxu0 0.0
  %602 = vmatpush.msra.mxu0 0.0
  %603 = vmatpush.msra.mxu0 %v585
  %604 = vmatpush.msra.mxu0 %v584
  %605 = vmatpush.msra.mxu0 %v583
  %606 = vmatpush.msra.mxu0 %v582
  %607 = vmatmul.f32.gmra.mxu0 %v589
  %v608 = vpop.f32.mrf.mxu0
  %v609 = vadd.f32 %v587, %v608
  %610 = vdwg.mxu0
  %v611 = vmax.f32 %v609, 0.0
  %vm612 = vcmp.ne.f32.partialorder %v609, %v609
  %v613 = vadd.f32 %v609, 0.0
  %v614 = vand.u32 2147483647, %v609
  %v615 = vsub.f32 0.0, %v614
  %v616 = vmul.f32 %v615, 1.442695
  %v617 = vpow.pop %v616
  %v618 = vadd.f32 %v617, 1.0
  %v619 = vlog2.pop %v618
  %v620 = vmul.f32 %v619, 0.6931472
  %v621 = vmul.f32 -0.5, %v617
  %v622 = vadd.f32 %v621, 1.0
  %v623 = vmul.f32 %v622, %v617
  %v624 = vand.u32 2147483647, %v617
  %vm625 = vcmp.lt.f32.partialorder %v624, 0.0004427343
  %v626 = vsel %vm625, %v623, %v620
  %v627 = vadd.f32 %v611, %v626
  %v628 = vsel %vm612, %v613, %v627
  %v629 = vmax.f32 %v628, 0.0001
  %v630 = vmin.f32 %v629, 10000.0
  %632 = vrot.lane.b32.xlu0 %v630, 120
  %v633 = vpop.permute.xlu0 %632
  %vm635 = vcmask 1048512
  %636 = vst.msk [vmem:[%s2 + $0x8] sm:$0xff] %vm635, %v633
  %vm637 = vcmask 326656
  %638 = vst.msk [vmem:[%s2 + $0x10] sm:$0xff] %vm637, %v633
  %v639 = vld [vmem:[%s1 + $0x1e8] sm:$0xff]
  %v640 = vld [vmem:[%s1 + $0x1f0] sm:$0xff]
  %v641 = vld [vmem:[%s1 + $0x1f8] sm:$0xff]
  %v642 = vld [vmem:[%s1 + $0x200] sm:$0xff]
  %v643 = vld [vmem:[%s1 + $0x208] sm:$0x1]
  %v644 = vperm.slane %v643, 0
  %v646 = vsel %vm77, %v542, 0
  %648 = vmatpush.msra.mxu0 0.0
  %649 = vmatpush.msra.mxu0 0.0
  %650 = vmatpush.msra.mxu0 0.0
  %651 = vmatpush.msra.mxu0 0.0
  %652 = vmatpush.msra.mxu0 0.0
  %653 = vmatpush.msra.mxu0 0.0
  %654 = vmatpush.msra.mxu0 0.0
  %655 = vmatpush.msra.mxu0 0.0
  %656 = vmatpush.msra.mxu0 0.0
  %657 = vmatpush.msra.mxu0 0.0
  %658 = vmatpush.msra.mxu0 0.0
  %659 = vmatpush.msra.mxu0 0.0
  %660 = vmatpush.msra.mxu0 %v642
  %661 = vmatpush.msra.mxu0 %v641
  %662 = vmatpush.msra.mxu0 %v640
  %663 = vmatpush.msra.mxu0 %v639
  %664 = vmatmul.f32.gmra.mxu0 %v646
  %v665 = vpop.f32.mrf.mxu0
  %v666 = vadd.f32 %v644, %v665
  %667 = vdwg.mxu0
  %v668 = vxor.u32 %v666, 2147483648
  %v669 = vmul.f32 %v668, 1.442695
  %v670 = vpow.pop %v669
  %v671 = vadd.f32 %v670, 1.0
  %v672 = vrcp.pop %v671
  %v673 = vmul.f32 %v671, %v672
  %v674 = vsub.f32 1.0, %v673
  %v675 = vmul.f32 %v672, %v674
  %v676 = vadd.f32 %v672, %v675
  %vm677 = vweird.f32 %v671
  %vm678 = vweird.f32 %v672
  %vm679 = vmor %vm677, %vm678
  %v680 = vsel %vm679, %v672, %v676
  %v681 = vand.u32 2147483647, %v671
  %vm682 = vcmp.eq.f32.partialorder %v681, 8.507059e+37
  %v683 = vand.u32 %v671, 2147483648
  %v684 = vor.u32 1.1754944e-38, %v683
  %v685 = vsel %vm682, %v684, %v680
  %v686 = vmul.f32 1.0, %v685
  %688 = vrot.lane.b32.xlu0 %v686, 40
  %v689 = vpop.permute.xlu0 %688
  %vm691 = vcmask 720192
  %692 = vst.msk [vmem:[%s2 + $0x10] sm:$0xff] %vm691, %v689
  %694 = vrot.lane.b32.xlu0 %v491, 88
  %v695 = vpop.permute.xlu0 %694
  %vm697 = vcmask 786112
  %698 = vst.msk [vmem:[%s2 + $0x10] sm:$0xff] %vm697, %v695
  // Predicated region
  $region10: #{forward.1} parent=0 // pred_check
    _
  $region11: #{forward.1} parent=0 // pred_check_branch
    %700 = sbr.rel (0) target = $region13
  $region12: #{forward.1} parent=0 // pred_region
    _
  $region13: #{forward.1} parent=0 // pred_fallthru
    _
  // Predicated region
  $region14: #{forward.1} parent=0 // pred_check
    _
  $region15: #{forward.1} parent=0 // pred_check_branch
    %702 = sbr.rel (0) target = $region17
  $region16: #{forward.1} parent=0 // pred_region
    _
  $region17: #{forward.1} parent=0 // pred_fallthru
    _

</llo_original>
